<compile_context>
chip_gen: v7x
topology: tpu7x:2x2x1
jax: 0.10.0
libtpu: 0.0.40
codegen_flags: <defaults>
</compile_context>

<pallas_src>
import functools
import math

import jax
import jax.numpy as jnp
from jax.experimental import pallas as pl
from jax.experimental.pallas import tpu as pltpu


# ----------------------------- small helpers --------------------------------

def _round_up(x, m):
    return ((x + m - 1) // m) * m


def _sublane(itemsize):
    # Native sublane granule: 8 (f32), 16 (bf16), 32 (int8/fp8).
    return max(8, 32 // max(1, int(itemsize)))


@functools.lru_cache(maxsize=None)
def _vmem_limit_bytes():
    """Scoped-VMEM limit derived from the chip: half of physical VMEM, capped
    at 64 MiB (=> 64 MiB on v5e/v6e, 32 MiB on v7x / unknown chips)."""
    cap = 64 << 20
    try:
        info = pltpu.get_tpu_info()
        cap = int(getattr(info, "vmem_capacity_bytes", cap))
    except Exception:
        pass
    return max(16 << 20, min(cap // 2, 64 << 20))


# ------------------------------ kernel bodies --------------------------------

def _resident_kernel(x_ref, w_ref, b_ref, o_ref):
    """Single-step matmul with a VMEM-resident [E, J, K] weight.

    grid = (batch_blocks, E); x_ref: (tb, J); w_ref: (E, J, K) resident;
    b_ref: (E, 1, K) resident; o_ref: (tb, K) (leading E dim squeezed).
    """
    e = pl.program_id(1)
    acc = jnp.dot(x_ref[...], w_ref[e], preferred_element_type=jnp.float32)
    o_ref[...] = (acc + b_ref[e].astype(jnp.float32)).astype(o_ref.dtype)


def _matmul_bias_kernel(x_ref, w_ref, b_ref, o_ref):
    """Single reduction step: out = x @ w + b (no accumulator round-trip)."""
    acc = jnp.dot(x_ref[...], w_ref[...], preferred_element_type=jnp.float32)
    o_ref[...] = (acc + b_ref[...].astype(jnp.float32)).astype(o_ref.dtype)


def _matmul_acc_kernel(x_ref, w_ref, b_ref, o_ref, acc_ref, *, red_axis):
    """Tiled reduction: accumulator initialized with the bias at step 0
    (no finalize add) and written out on the last reduction step."""
    j = pl.program_id(red_axis)

    @pl.when(j == 0)
    def _init():
        acc_ref[...] = jnp.broadcast_to(
            b_ref[...].astype(jnp.float32), acc_ref.shape)

    acc_ref[...] += jnp.dot(x_ref[...], w_ref[...],
                            preferred_element_type=jnp.float32)

    @pl.when(j == pl.num_programs(red_axis) - 1)
    def _finalize():
        o_ref[...] = acc_ref[...].astype(o_ref.dtype)


# ------------------------------ tile selection --------------------------------

def _resident_tb(B, J, K, E, in_isz, out_isz, b_isz, budget, sub):
    """Batch tile for the resident-weight path, or None if the whole [E, J, K]
    weight does not fit the VMEM budget (double-buffered, conservative)."""
    w_bytes = 2 * E * J * K * in_isz + 2 * E * 8 * K * b_isz
    tb = B if B <= 512 else 512
    while True:
        foot = w_bytes + 2 * tb * J * in_isz + 2 * tb * K * out_isz
        if foot <= budget:
            break
        if tb <= sub:
            return None
        tb = max(sub, ((tb // 2) // sub) * sub)
    # v7x megacore: make sure the parallel grid has >= 2 iterations.
    if E * pl.cdiv(B, tb) < 2 and B >= 2 * sub:
        tb = _round_up(pl.cdiv(B, 2), sub)
    return tb


def _fit_tiles(B, J, N, in_isz, out_isz, budget, sub):
    """(tb, tj, tn) for the tiled fallback paths, shrunk to the VMEM budget."""
    tb = B if B <= 512 else 512
    tn = N if N <= 1024 else 1024
    tj = J if J <= 2048 else 2048

    def foot(tb_, tj_, tn_):
        return (2 * (tb_ * tj_ + tj_ * tn_) * in_isz   # x / w double-buffered
                + 2 * tb_ * tn_ * out_isz              # out double-buffered
                + tb_ * tn_ * 4                        # f32 accumulator
                + 2 * 8 * tn_ * 4)                     # bias

    while foot(tb, tj, tn) > budget:
        if tj > 256 and tj >= tn and tj >= tb:
            tj = max(256, ((tj // 2) // 128) * 128)
        elif tn > 128:
            tn = max(128, ((tn // 2) // 128) * 128)
        elif tb > sub:
            tb = max(sub, ((tb // 2) // sub) * sub)
        elif tj > 256:
            tj = max(256, ((tj // 2) // 128) * 128)
        else:
            break
    return tb, tj, tn


# ----------------------------- pallas_call paths ------------------------------

def _resident_forward(x, w_ejk, b_e1k, *, shared, tb, out_dtype, limit):
    """out[E, B, K] = x @ w_ejk[e] + b_e1k[e], weight VMEM-resident.

    shared=True : x is [B, J]    (every ensemble member sees the same rows)
    shared=False: x is [E, B, J]
    """
    E, J, K = w_ejk.shape
    B = x.shape[0] if shared else x.shape[1]
    grid = (pl.cdiv(B, tb), E)   # batch outer => x block resident across e

    if shared:
        x_spec = pl.BlockSpec((tb, J), lambda b, e: (b, 0))
        x_reads = B * J
    else:
        x_spec = pl.BlockSpec((None, tb, J), lambda b, e: (e, b, 0))
        x_reads = E * B * J

    cost = pl.CostEstimate(
        flops=int(2 * B * J * K * E),
        transcendentals=0,
        bytes_accessed=int((x_reads + E * J * K) * jnp.dtype(x.dtype).itemsize
                           + E * K * jnp.dtype(b_e1k.dtype).itemsize
                           + E * B * K * jnp.dtype(out_dtype).itemsize))

    return pl.pallas_call(
        _resident_kernel,
        out_shape=jax.ShapeDtypeStruct((E, B, K), out_dtype),
        grid_spec=pltpu.PrefetchScalarGridSpec(
            num_scalar_prefetch=0,
            grid=grid,
            in_specs=[
                x_spec,
                # Whole weight / bias as single resident blocks: constant
                # index_map => DMA'd exactly once for the whole grid.
                pl.BlockSpec((E, J, K), lambda b, e: (0, 0, 0)),
                pl.BlockSpec((E, 1, K), lambda b, e: (0, 0, 0)),
            ],
            out_specs=pl.BlockSpec((None, tb, K), lambda b, e: (e, b, 0)),
        ),
        compiler_params=pltpu.CompilerParams(
            dimension_semantics=("parallel", "parallel"),
            vmem_limit_bytes=limit),
        cost_estimate=cost,
    )(x, w_ejk, b_e1k)


def _fused_forward(x2d, w2d, b2d, *, out_dtype, limit, budget):
    """out[B, N] = x2d[B, J] @ w2d[J, N] + b2d[1, N]   (N = K*E fused lanes)."""
    B, J = x2d.shape
    N = w2d.shape[1]
    isz = jnp.dtype(x2d.dtype).itemsize
    osz = jnp.dtype(out_dtype).itemsize
    sub = _sublane(isz)

    tb, tj, tn = _fit_tiles(B, J, N, isz, osz, budget, sub)
    # v7x megacore: >= 2 parallel iterations when the batch allows it.
    if pl.cdiv(B, tb) * pl.cdiv(N, tn) < 2 and B >= 2 * sub:
        tb = _round_up(pl.cdiv(B, 2), sub)

    xp, wp = x2d, w2d
    J_pad = _round_up(J, tj)
    if J_pad != J:   # only the reduction axis ever needs real zero padding
        xp = jnp.pad(xp, ((0, 0), (0, J_pad - J)))
        wp = jnp.pad(wp, ((0, J_pad - J), (0, 0)))
    gj = J_pad // tj

    grid = (pl.cdiv(B, tb), pl.cdiv(N, tn), gj)
    if gj == 1:
        kernel, scratch = _matmul_bias_kernel, []
    else:
        kernel = functools.partial(_matmul_acc_kernel, red_axis=2)
        scratch = [pltpu.VMEM((tb, tn), jnp.float32)]

    cost = pl.CostEstimate(
        flops=int(2 * B * J * N), transcendentals=0,
        bytes_accessed=int((B * J_pad + J_pad * N + N) * isz + B * N * osz))

    return pl.pallas_call(
        kernel,
        out_shape=jax.ShapeDtypeStruct((B, N), out_dtype),
        grid_spec=pltpu.PrefetchScalarGridSpec(
            num_scalar_prefetch=0,
            grid=grid,
            in_specs=[
                pl.BlockSpec((tb, tj), lambda b, n, j: (b, j)),
                pl.BlockSpec((tj, tn), lambda b, n, j: (j, n)),
                pl.BlockSpec((1, tn), lambda b, n, j: (0, n)),
            ],
            out_specs=pl.BlockSpec((tb, tn), lambda b, n, j: (b, n)),
            scratch_shapes=scratch,
        ),
        compiler_params=pltpu.CompilerParams(
            dimension_semantics=("parallel", "parallel", "arbitrary"),
            vmem_limit_bytes=limit),
        cost_estimate=cost,
    )(xp, wp, b2d)


def _ensemble_tiled_forward(x3, w_ejk, b_e1k, *, out_dtype, limit, budget):
    """Fallback for share_input=False when the weight does not fit VMEM:
    out[E, B, K] = x3[E, B, J] @ w_ejk[E, J, K] + b_e1k[E, 1, K], tiled."""
    E, B, J = x3.shape
    K = w_ejk.shape[2]
    isz = jnp.dtype(x3.dtype).itemsize
    osz = jnp.dtype(out_dtype).itemsize
    sub = _sublane(isz)

    tb, tj, tk = _fit_tiles(B, J, K, isz, osz, budget, sub)
    if E * pl.cdiv(B, tb) * pl.cdiv(K, tk) < 2 and B >= 2 * sub:
        tb = _round_up(pl.cdiv(B, 2), sub)

    xp, wp = x3, w_ejk
    J_pad = _round_up(J, tj)
    if J_pad != J:
        xp = jnp.pad(xp, ((0, 0), (0, 0), (0, J_pad - J)))
        wp = jnp.pad(wp, ((0, 0), (0, J_pad - J), (0, 0)))
    gj = J_pad // tj

    grid = (E, pl.cdiv(K, tk), pl.cdiv(B, tb), gj)
    if gj == 1:
        kernel, scratch = _matmul_bias_kernel, []
    else:
        kernel = functools.partial(_matmul_acc_kernel, red_axis=3)
        scratch = [pltpu.VMEM((tb, tk), jnp.float32)]

    # Leading ensemble dims are squeezed (None) so the kernel refs are rank-2
    # and the same kernel bodies as the fused path are reused.
    return pl.pallas_call(
        kernel,
        out_shape=jax.ShapeDtypeStruct((E, B, K), out_dtype),
        grid_spec=pltpu.PrefetchScalarGridSpec(
            num_scalar_prefetch=0,
            grid=grid,
            in_specs=[
                pl.BlockSpec((None, tb, tj), lambda e, k, b, j: (e, b, j)),
                pl.BlockSpec((None, tj, tk), lambda e, k, b, j: (e, j, k)),
                pl.BlockSpec((None, 1, tk), lambda e, k, b, j: (e, 0, k)),
            ],
            out_specs=pl.BlockSpec((None, tb, tk), lambda e, k, b, j: (e, b, k)),
            scratch_shapes=scratch,
        ),
        compiler_params=pltpu.CompilerParams(
            dimension_semantics=("parallel", "parallel", "parallel", "arbitrary"),
            vmem_limit_bytes=limit),
    )(xp, wp, b_e1k)


# --------------------------------- public API ---------------------------------

def prepare_ensemble_params(weight, bias):
    """Re-layout PyTorch-style params once, outside the hot path:
    weight [J, K, E] -> [E, J, K], bias [K, E] -> [E, 1, K]."""
    w_ejk = jnp.transpose(weight, (2, 0, 1))
    b_e1k = jnp.transpose(bias, (1, 0))[:, None, :]
    return w_ejk, b_e1k


def ensemble_linear_forward(x, weight, bias, *, share_input=True,
                            compute_dtype=None, packed_params=None,
                            vmem_budget_bytes=None):
    """Forward of EnsembleLinear.

    Args:
      x: share_input=True  -> [..., in_features]
         share_input=False -> [ensemble, ..., in_features]
      weight: [in_features, out_features, ensemble_size]   (PyTorch layout)
      bias:   [out_features, ensemble_size]
      compute_dtype: optional cast of x/W at the kernel boundary
        (jnp.bfloat16 recommended for inference); accumulation and bias add
        stay f32, the output dtype follows x.
      packed_params: optional (w_ejk, b_e1k) from prepare_ensemble_params()
        so the weight re-layout is not paid on every call.
      vmem_budget_bytes: tiling-budget override (testing / tuning only).

    Returns: [ensemble, *batch_dims, out_features]
    """
    J, K, E = weight.shape
    out_dtype = x.dtype
    cdt = jnp.dtype(compute_dtype) if compute_dtype is not None else jnp.dtype(x.dtype)
    in_isz, out_isz = cdt.itemsize, jnp.dtype(out_dtype).itemsize
    b_isz = jnp.dtype(bias.dtype).itemsize
    sub = _sublane(in_isz)
    limit = _vmem_limit_bytes()
    budget = int(limit * 0.7) if vmem_budget_bytes is None else int(vmem_budget_bytes)

    def packed():
        if packed_params is not None:
            w_ejk, b_e1k = packed_params
        else:
            w_ejk, b_e1k = prepare_ensemble_params(weight, bias)
        return w_ejk.astype(cdt), b_e1k

    if share_input:
        batch_shape = x.shape[:-1]
        B = int(math.prod(batch_shape)) if batch_shape else 1
        x2d = x.reshape(B, J).astype(cdt)
        tb = (_resident_tb(B, J, K, E, in_isz, out_isz, b_isz, budget, sub)
              if K >= 128 else None)
        if tb is not None:
            # Direct path: output written as [E, B, K]; no post-kernel
            # lane transpose, weight resident in VMEM, x read once.
            w_ejk, b_e1k = packed()
            out = _resident_forward(x2d, w_ejk, b_e1k, shared=True, tb=tb,
                                    out_dtype=out_dtype, limit=limit)
        else:
            # Fused K*E lane layout (dense lanes, best when K < 128); the
            # weight/bias reshapes are free views of the PyTorch layout.
            w2d = weight.reshape(J, K * E).astype(cdt)
            b2d = bias.reshape(1, K * E)
            out2d = _fused_forward(x2d, w2d, b2d, out_dtype=out_dtype,
                                   limit=limit, budget=budget)
            out = jnp.moveaxis(out2d.reshape(B, K, E), -1, 0)
        return out.reshape((E,) + batch_shape + (K,))

    # share_input = False
    assert x.shape[0] == E, "leading dim of x must equal ensemble_size"
    batch_shape = x.shape[1:-1]
    B = int(math.prod(batch_shape)) if batch_shape else 1
    x3 = x.reshape(E, B, J).astype(cdt)
    w_ejk, b_e1k = packed()
    tb = _resident_tb(B, J, K, E, in_isz, out_isz, b_isz, budget, sub)
    if tb is not None:
        out = _resident_forward(x3, w_ejk, b_e1k, shared=False, tb=tb,
                                out_dtype=out_dtype, limit=limit)
    else:
        out = _ensemble_tiled_forward(x3, w_ejk, b_e1k, out_dtype=out_dtype,
                                      limit=limit, budget=budget)
    return out.reshape((E,) + batch_shape + (K,))


# -------------------- deterministic parameter init (PyTorch-style) -----------

def init_params(key, in_features, out_features, ensemble_size, dtype=jnp.float32):
    # kaiming_uniform_(a=sqrt(5)) on a [in_features, out_features] matrix:
    # PyTorch fan_in of a 2D tensor is dim-1 => out_features here.
    kw, kb = jax.random.split(key)
    a = math.sqrt(5)
    gain = math.sqrt(2.0 / (1.0 + a * a))
    w_bound = gain * math.sqrt(3.0 / out_features)
    weight = jax.random.uniform(
        kw, (in_features, out_features, ensemble_size),
        minval=-w_bound, maxval=w_bound, dtype=dtype)
    b_bound = 1.0 / math.sqrt(out_features)
    bias = jax.random.uniform(
        kb, (out_features, ensemble_size),
        minval=-b_bound, maxval=b_bound, dtype=dtype)
    return weight, bias


# -------------------------------- reference -----------------------------------

def ref_forward(x, weight, bias, *, share_input=True):
    if share_input:
        res = jnp.einsum('...j,jkb->...kb', x, weight) + bias
    else:
        res = jnp.einsum('b...j,jkb->...kb', x, weight) + bias
    return jnp.moveaxis(res, -1, 0)


# ----------------------------------- main --------------------------------------

if __name__ == "__main__":
    key = jax.random.PRNGKey(0)
    ks = jax.random.split(key, 8)

    def check(out, ref, name, atol=1e-5, rtol=1e-5):
        assert out.shape == ref.shape, (name, out.shape, ref.shape)
        diff = float(jnp.max(jnp.abs(out.astype(jnp.float32) - ref.astype(jnp.float32))))
        assert jnp.allclose(out, ref, atol=atol, rtol=rtol), (name, diff)

    # 1) shared, small K (fused K*E lane path, single reduction step)
    J, K, E, B = 32, 64, 4, 8
    w, b = init_params(ks[0], J, K, E)
    x = jax.random.normal(ks[1], (B, J), jnp.float32)
    out = jax.block_until_ready(ensemble_linear_forward(x, w, b, share_input=True))
    check(out, ref_forward(x, w, b, share_input=True), "shared_fused")

    # 2) shared, K >= 128 -> direct resident path (output written as [E, B, K]),
    #    with a multi-dim batch to exercise the reshape plumbing.
    J2, K2, E2 = 48, 128, 3
    w2, b2 = init_params(ks[2], J2, K2, E2)
    x2 = jax.random.normal(ks[3], (2, 8, J2), jnp.float32)
    out2 = jax.block_until_ready(ensemble_linear_forward(x2, w2, b2, share_input=True))
    check(out2, ref_forward(x2, w2, b2, share_input=True), "shared_direct")

    # 3) unshared, resident-weight path
    x3 = jax.random.normal(ks[4], (E, B, J), jnp.float32)
    out3 = jax.block_until_ready(ensemble_linear_forward(x3, w, b, share_input=False))
    check(out3, ref_forward(x3, w, b, share_input=False), "unshared_resident")

    # 4) forced tiled fallbacks (tiny budget) incl. multi-step reduction + J pad
    J4, K4, E4, B4 = 300, 64, 2, 24
    w4, b4 = init_params(ks[5], J4, K4, E4)
    x4s = jax.random.normal(ks[6], (B4, J4), jnp.float32)
    out4 = jax.block_until_ready(ensemble_linear_forward(
        x4s, w4, b4, share_input=True, vmem_budget_bytes=1))
    check(out4, ref_forward(x4s, w4, b4, share_input=True),
          "shared_tiled_multistep", atol=1e-4, rtol=1e-4)

    x4u = jax.random.normal(ks[7], (E4, B4, J4), jnp.float32)
    out5 = jax.block_until_ready(ensemble_linear_forward(
        x4u, w4, b4, share_input=False, vmem_budget_bytes=1))
    check(out5, ref_forward(x4u, w4, b4, share_input=False),
          "unshared_tiled_multistep", atol=1e-4, rtol=1e-4)

    # 5) bf16 compute path (input-rounding only; accumulation stays f32)
    out6 = jax.block_until_ready(ensemble_linear_forward(
        x2, w2, b2, share_input=True, compute_dtype=jnp.bfloat16))
    check(out6, ref_forward(x2, w2, b2, share_input=True),
          "shared_bf16", atol=5e-2, rtol=5e-2)

    print("KERNEL_OK")
</pallas_src>

<mosaic_0001>
module attributes {stable_mosaic.version = 11 : i64} {
  func.func @_matmul_bias_kernel(%arg0: i32, %arg1: i32, %arg2: i32, %arg3: memref<8x32xf32, #tpu.memory_space<vmem>>, %arg4: memref<32x256xf32, #tpu.memory_space<vmem>>, %arg5: memref<1x256xf32, #tpu.memory_space<vmem>>, %arg6: memref<8x256xf32, #tpu.memory_space<vmem>>) attributes {dimension_semantics = [#tpu.dimension_semantics<parallel>, #tpu.dimension_semantics<parallel>, #tpu.dimension_semantics<arbitrary>], iteration_bounds = array<i64: 1, 1, 1>, scalar_prefetch = 0 : i64, scratch_operands = 0 : i64, tpu.core_type = #tpu.core_type<tc>, window_params = [{transform_indices = @transform_0, window_bounds = array<i64: 8, 32>}, {transform_indices = @transform_1, window_bounds = array<i64: 32, 256>}, {transform_indices = @transform_2, window_bounds = array<i64: 1, 256>}, {transform_indices = @transform_3, window_bounds = array<i64: 8, 256>}]} {
    %c0 = arith.constant 0 : index
    %c0_0 = arith.constant 0 : index
    %0 = vector.load %arg3[%c0, %c0_0] : memref<8x32xf32, #tpu.memory_space<vmem>>, vector<8x32xf32>
    %c0_1 = arith.constant 0 : index
    %c0_2 = arith.constant 0 : index
    %1 = vector.load %arg4[%c0_1, %c0_2] : memref<32x256xf32, #tpu.memory_space<vmem>>, vector<32x256xf32>
    %cst = arith.constant dense<0.000000e+00> : vector<8x256xf32>
    %2 = tpu.matmul %0, %1, %cst {dimension_numbers = #tpu.dot_dimension_numbers<[1], [0], [0], [1], [0, 0, 1, 1], [], []>} : vector<8x32xf32>, vector<32x256xf32>, vector<8x256xf32> -> vector<8x256xf32>
    %c0_3 = arith.constant 0 : index
    %c0_4 = arith.constant 0 : index
    %3 = vector.load %arg5[%c0_3, %c0_4] : memref<1x256xf32, #tpu.memory_space<vmem>>, vector<1x256xf32>
    %4 = vector.broadcast %3 : vector<1x256xf32> to vector<8x256xf32>
    %5 = arith.addf %2, %4 : vector<8x256xf32>
    %c0_5 = arith.constant 0 : index
    %c0_6 = arith.constant 0 : index
    %6 = vector.load %arg6[%c0_5, %c0_6] : memref<8x256xf32, #tpu.memory_space<vmem>>, vector<8x256xf32>
    tpu.vector_store %arg6[%c0_5, %c0_6], %5 {strides = array<i32>} : memref<8x256xf32, #tpu.memory_space<vmem>>, vector<8x256xf32>,
    return
  }
  func.func @transform_0(%arg0: i32, %arg1: i32, %arg2: i32) -> (i32, i32) {
    %c0_i32 = arith.constant 0 : i32
    return %arg0, %arg2 : i32, i32
  }
  func.func @transform_1(%arg0: i32, %arg1: i32, %arg2: i32) -> (i32, i32) {
    %c0_i32 = arith.constant 0 : i32
    return %arg2, %arg1 : i32, i32
  }
  func.func @transform_2(%arg0: i32, %arg1: i32, %arg2: i32) -> (i32, i32) {
    %c0_i32 = arith.constant 0 : i32
    %c0_i32_0 = arith.constant 0 : i32
    return %c0_i32, %arg1 : i32, i32
  }
  func.func @transform_3(%arg0: i32, %arg1: i32, %arg2: i32) -> (i32, i32) {
    %c0_i32 = arith.constant 0 : i32
    return %arg0, %arg1 : i32, i32
  }
}

</mosaic_0001>

<llo_original>
// kernel: tpu_custom_call.1
$region0: #{tpu_custom_call.1}
  #allocation0 [shape = 'u32[]', space=smem, size = 0x4, offset = 0x4, fixed_abs, tag = 'smem constant byte address 0x4 - core index']
  #allocation1 [shape = 'u32[144,128]{1,0:T(1,128)}', space=vmem, size = 0x12000, scoped, tag = 'internal scratch']
  %s0 = inlined_call_operand.hbm [shape: f32[8,32], index: 0, kind: input, shape index: {}]
  %s1 = inlined_call_operand.hbm [shape: f32[32,256], index: 1, kind: input, shape index: {}]
  %s2 = inlined_call_operand.vmem [shape: f32[1,256], index: 2, kind: input, shape index: {}]
  %s3 = inlined_call_operand.hbm [shape: f32[8,256], index: 3, kind: output, shape index: {}]
  %s4 = sld [smem:[#allocation0]]
  $region30: #{tpu_custom_call.1} parent=0
    _
  %s6 = ssub.s32 1, %s4
  %s7 = scalar_select 0, %s6, %s4
  $region1: #{tpu_custom_call.1} parent=0
    #allocation2 [shape = 'u8[4096]{0}', space=vmem, size = 0x1000, scoped, tag = 'input window, operand 0, single buffered']
    #allocation3 [shape = 's32[1]{0}', space=sflag, size = 0x4, scoped, tag = 'scoped memory for tpu_custom_call.1']
    #allocation4 [shape = 's32[1]{0}', space=sflag, size = 0x4, scoped, tag = 'scoped memory for tpu_custom_call.1']
    #allocation5 [shape = 'u8[32768]{0}', space=vmem, size = 0x8000, scoped, tag = 'input window, operand 1, single buffered']
    #allocation6 [shape = 's32[1]{0}', space=sflag, size = 0x4, scoped, tag = 'scoped memory for tpu_custom_call.1']
    #allocation7 [shape = 'u8[8192]{0}', space=vmem, size = 0x2000, scoped, tag = 'output window, operand 0, single buffered']
    %8 = vsyncpa [#allocation3], 0
    %9 = vsyncpa [#allocation6], 0
    %10 = vsyncpa [#allocation4], 0
    // Predicated region
    $region2: #{tpu_custom_call.1} parent=1 // pred_check
      _
    $region3: #{tpu_custom_call.1} parent=1 // pred_check_branch
      %12 = sbr.rel (0) target = $region5
    $region4: #{tpu_custom_call.1} parent=1 // pred_region
      %s14 = ssub.s32 128, 128
      %15 = vsyncadd [#allocation3], %s14
      %s17 = sshll.u32 [#allocation2], 4
      %s18 = int_to_ptr.vmem [resolvable:$true] %s17
      %20 = dma.hbm_to_vmem [thread:$0]  %s0, 128, %s18, [#allocation3]
    $region5: #{tpu_custom_call.1} parent=1 // pred_fallthru
      _
    // Predicated region
    $region6: #{tpu_custom_call.1} parent=1 // pred_check
      _
    $region7: #{tpu_custom_call.1} parent=1 // pred_check_branch
      %22 = sbr.rel (0) target = $region9
    $region8: #{tpu_custom_call.1} parent=1 // pred_region
      %s24 = ssub.s32 1024, 1024
      %25 = vsyncadd [#allocation6], %s24
      %s26 = sshll.u32 [#allocation5], 4
      %s27 = int_to_ptr.vmem [resolvable:$true] %s26
      %32 = dma.hbm_to_vmem [thread:$0]  %s1, 1024, %s27, [#allocation6], 256, 256, 16
    $region9: #{tpu_custom_call.1} parent=1 // pred_fallthru
      _
    // Predicated region
    $region10: #{tpu_custom_call.1} parent=1 // pred_check
      _
    $region11: #{tpu_custom_call.1} parent=1 // pred_check_branch
      %34 = sbr.rel (0) target = $region13
    $region12: #{tpu_custom_call.1} parent=1 // pred_region
      _
    $region13: #{tpu_custom_call.1} parent=1 // pred_fallthru
      _
    // Predicated region
    $region14: #{tpu_custom_call.1} parent=1 // pred_check
      _
    $region15: #{tpu_custom_call.1} parent=1 // pred_check_branch
      %36 = sbr.rel (0) target = $region17
    $region16: #{tpu_custom_call.1} parent=1 // pred_region
      %37 = dma.done [#allocation3], 128
    $region17: #{tpu_custom_call.1} parent=1 // pred_fallthru
      _
    // Predicated region
    $region18: #{tpu_custom_call.1} parent=1 // pred_check
      _
    $region19: #{tpu_custom_call.1} parent=1 // pred_check_branch
      %39 = sbr.rel (0) target = $region21
    $region20: #{tpu_custom_call.1} parent=1 // pred_region
      %40 = dma.done [#allocation6], 1024
    $region21: #{tpu_custom_call.1} parent=1 // pred_fallthru
      _
    %v41 = vld [vmem:[#allocation2] sm:$0xff]
    %v42 = vld [vmem:[#allocation5] sm:$0xff]
    %v43 = vld [vmem:[#allocation5 + $0x8] sm:$0xff]
    %v44 = vld [vmem:[#allocation5 + $0x10] sm:$0xff]
    %v45 = vld [vmem:[#allocation5 + $0x18] sm:$0xff]
    %v46 = vld [vmem:[#allocation5 + $0x20] sm:$0xff]
    %v47 = vld [vmem:[#allocation5 + $0x28] sm:$0xff]
    %v48 = vld [vmem:[#allocation5 + $0x30] sm:$0xff]
    %v49 = vld [vmem:[#allocation5 + $0x38] sm:$0xff]
    %v50 = vld [vmem:[%s2] sm:$0x3]
    %v52 = vlaneseq
    %v53 = vshrl.u32 %v52, 7
    %v54 = vsub.s32 0, %v53
    %v55 = vrot.slane %v50, %v54
    %v56 = vlaneseq
    %v57 = vshrl.u32 %v56, 7
    %v58 = vsub.s32 1, %v57
    %v59 = vrot.slane %v50, %v58
    %vm62 = vcmask 261120
    %v64 = vsel %vm62, %v41, 0
    %66 = vmatprep.subr.mxu0 %v43
    %67 = vmatpush1.msra.mxu0 %v42
    %68 = vmatprep.subr.mxu0 %v45
    %69 = vmatpush1.msra.mxu0 %v44
    %70 = vmatprep.subr.mxu0 %v47
    %71 = vmatpush1.msra.mxu0 %v46
    %72 = vmatprep.subr.mxu0 %v49
    %73 = vmatpush1.msra.mxu0 %v48
    %74 = vmatprep.subr.mxu0 0.0
    %75 = vmatpush1.msra.mxu0 0.0
    %76 = vmatprep.subr.mxu0 0.0
    %77 = vmatpush1.msra.mxu0 0.0
    %78 = vmatprep.subr.mxu0 0.0
    %79 = vmatpush1.msra.mxu0 0.0
    %80 = vmatprep.subr.mxu0 0.0
    %81 = vmatpush1.msra.mxu0 0.0
    %82 = vmatprep.subr.mxu0 0.0
    %83 = vmatpush1.msra.mxu0 0.0
    %84 = vmatprep.subr.mxu0 0.0
    %85 = vmatpush1.msra.mxu0 0.0
    %86 = vmatprep.subr.mxu0 0.0
    %87 = vmatpush1.msra.mxu0 0.0
    %88 = vmatprep.subr.mxu0 0.0
    %89 = vmatpush1.msra.mxu0 0.0
    %90 = vmatprep.subr.mxu0 0.0
    %91 = vmatpush1.msra.mxu0 0.0
    %92 = vmatprep.subr.mxu0 0.0
    %93 = vmatpush1.msra.mxu0 0.0
    %94 = vmatprep.subr.mxu0 0.0
    %95 = vmatpush1.msra.mxu0 0.0
    %96 = vmatprep.subr.mxu0 0.0
    %97 = vmatpush1.msra.mxu0 0.0
    %98 = vmatprep.subr.mxu0 0.0
    %99 = vmatpush1.msra.mxu0 0.0
    %100 = vmatprep.subr.mxu0 0.0
    %101 = vmatpush1.msra.mxu0 0.0
    %102 = vmatprep.subr.mxu0 0.0
    %103 = vmatpush1.msra.mxu0 0.0
    %104 = vmatprep.subr.mxu0 0.0
    %105 = vmatpush1.msra.mxu0 0.0
    %106 = vmatprep.subr.mxu0 0.0
    %107 = vmatpush1.msra.mxu0 0.0
    %108 = vmatprep.subr.mxu0 0.0
    %109 = vmatpush1.msra.mxu0 0.0
    %110 = vmatprep.subr.mxu0 0.0
    %111 = vmatpush1.msra.mxu0 0.0
    %112 = vmatprep.subr.mxu0 0.0
    %113 = vmatpush1.msra.mxu0 0.0
    %114 = vmatprep.subr.mxu0 0.0
    %115 = vmatpush1.msra.mxu0 0.0
    %116 = vmatprep.subr.mxu0 0.0
    %117 = vmatpush1.msra.mxu0 0.0
    %118 = vmatprep.subr.mxu0 0.0
    %119 = vmatpush1.msra.mxu0 0.0
    %120 = vmatprep.subr.mxu0 0.0
    %121 = vmatpush1.msra.mxu0 0.0
    %122 = vmatprep.subr.mxu0 0.0
    %123 = vmatpush1.msra.mxu0 0.0
    %124 = vmatprep.subr.mxu0 0.0
    %125 = vmatpush1.msra.mxu0 0.0
    %126 = vmatprep.subr.mxu0 0.0
    %127 = vmatpush1.msra.mxu0 0.0
    %128 = vmatprep.subr.mxu0 0.0
    %129 = vmatpush1.msra.mxu0 0.0
    %130 = vmatprep.mubr.f32.mxu0 0.0
    %131 = vmatmul.mubr.f32.gmra.mrb[0].mxu0 %v64
    %v132 = vpop.f32.mrb[0].mxu0
    %v133 = vadd.f32 %v55, %v132
    %v134 = vpop.f32.mrb[0].mxu0
    %v135 = vadd.f32 %v59, %v134
    %136 = vdwg.mxu0
    %137 = vst [vmem:[#allocation7] sm:$0xff] %v133
    %138 = vst [vmem:[#allocation7 + $0x8] sm:$0xff] %v135
    // Predicated region
    $region22: #{tpu_custom_call.1} parent=1 // pred_check
      _
    $region23: #{tpu_custom_call.1} parent=1 // pred_check_branch
      %140 = sbr.rel (0) target = $region25
    $region24: #{tpu_custom_call.1} parent=1 // pred_region
      %s142 = ssub.s32 256, 256
      %143 = vsyncadd [#allocation4], %s142
      %s145 = sshll.u32 [#allocation7], 4
      %s146 = int_to_ptr.vmem [resolvable:$true] %s145
      %148 = dma.vmem_to_hbm [thread:$0]  %s146, 256, %s3, [#allocation4]
    $region25: #{tpu_custom_call.1} parent=1 // pred_fallthru
      _
    // Predicated region
    $region26: #{tpu_custom_call.1} parent=1 // pred_check
      _
    $region27: #{tpu_custom_call.1} parent=1 // pred_check_branch
      %150 = sbr.rel (0) target = $region29
    $region28: #{tpu_custom_call.1} parent=1 // pred_region
      %151 = dma.done [#allocation4], 256
    $region29: #{tpu_custom_call.1} parent=1 // pred_fallthru
      _
    %152 = vsyncpa [#allocation3], 1
    %153 = vsyncpa [#allocation6], 1
    %154 = vsyncpa [#allocation4], 1

</llo_original>
